<compile_context>
chip_gen: v5e
topology: v5e:2x2
jax: 0.10.0
libtpu: 0.0.40
codegen_flags: <defaults>
</compile_context>

<pallas_src>
import math

import jax
import jax.numpy as jnp
from jax.experimental import pallas as pl
from jax.experimental.pallas import tpu as pltpu


_LANE = 128  # vreg lane width (last dim)


def _flatten_copy_kernel(x_ref, o_ref):
    # Identity copy of the current (tile_rows, 128) tile: Flatten's forward is
    # a reshape, so the kernel's only job is streaming the bytes.
    o_ref[...] = x_ref[...]


def _sublane_align(itemsize: int) -> int:
    # Packed sublane count: 8 for 4-byte dtypes, 16 for 2-byte, 32 for 1-byte.
    return 8 * max(1, 4 // max(1, itemsize))


def flatten(
    x: jax.Array,
    *,
    materialize: bool = False,
    target_block_bytes: int = 2 << 20,
) -> jax.Array:
    """Pallas equivalent of torch `input_tensor.view(input_tensor.size(0), -1)`.

    By default returns the metadata-only reshape (free).  With
    `materialize=True` the result is streamed through a Pallas identity-copy
    kernel into a fresh buffer (full HBM read + write of B*N elements).
    """
    assert x.ndim >= 1, "Flatten expects at least a batch dimension"
    b = x.shape[0]
    n = math.prod(x.shape[1:]) if x.ndim > 1 else 1
    total = b * n
    itemsize = jnp.dtype(x.dtype).itemsize

    # Row-major collapse of all non-batch dims (matches torch .view on a
    # contiguous NCHW tensor).  This is layout glue, not compute.
    x_flat = x.reshape(b, n)

    if not materialize:
        # Flatten of a contiguous array is metadata-only; do not spend
        # 2 * B*N*itemsize of HBM traffic on it.
        return x_flat

    if total == 0 or total % _LANE != 0:
        # Element stream is not lane-aligned; fall back to the free reshape
        # rather than emitting masked partial stores for zero compute.
        return x_flat

    rows = total // _LANE
    align = _sublane_align(itemsize)

    # Fixed, sublane-aligned tile sized to ~target_block_bytes; ragged final
    # block is handled by Pallas (no exact-divisor search that can collapse
    # to tiny tiles and thousands of grid steps).
    target_rows = max(align, target_block_bytes // (_LANE * itemsize))
    target_rows -= target_rows % align
    target_rows = max(align, target_rows)

    if rows <= target_rows:
        tile_rows = rows          # block == full array dims: always legal
        grid = (1,)
    else:
        tile_rows = target_rows
        grid = (pl.cdiv(rows, tile_rows),)

    tile_bytes = tile_rows * _LANE * itemsize
    # Double-buffered in + out blocks plus headroom; stays within the 16 MiB
    # scoped default that every generation (v5e/v6e/v7x) supports.
    vmem_limit = max(16 * 1024 * 1024, 6 * tile_bytes)

    # Lane/sublane-dense view of the whole element stream: (rows, 128).
    x_stream = x_flat.reshape(rows, _LANE)

    out_stream = pl.pallas_call(
        _flatten_copy_kernel,
        out_shape=jax.ShapeDtypeStruct((rows, _LANE), x.dtype),
        grid=grid,
        in_specs=[pl.BlockSpec((tile_rows, _LANE), lambda i: (i, 0))],
        out_specs=pl.BlockSpec((tile_rows, _LANE), lambda i: (i, 0)),
        compiler_params=pltpu.CompilerParams(
            dimension_semantics=("parallel",),
            vmem_limit_bytes=vmem_limit,
        ),
        cost_estimate=pl.CostEstimate(
            flops=0,
            transcendentals=0,
            bytes_accessed=2 * total * itemsize,
        ),
    )(x_stream)

    return out_stream.reshape(b, n)


if __name__ == "__main__":
    key = jax.random.PRNGKey(0)

    # Default path: metadata-only reshape (the recommended production path).
    x = jax.random.normal(key, (2, 4, 16, 16), dtype=jnp.float32)
    out_free = jax.block_until_ready(flatten(x))
    ref = x.reshape(x.shape[0], -1)
    assert out_free.shape == (2, 4 * 16 * 16), out_free.shape
    assert jnp.array_equal(out_free, ref), "free-reshape flatten mismatch"

    # Materializing copy kernel, single-block path.
    out_mat = jax.block_until_ready(flatten(x, materialize=True))
    assert out_mat.shape == (2, 4 * 16 * 16) and out_mat.dtype == x.dtype
    assert jnp.array_equal(out_mat, ref), "Pallas flatten mismatch (single block)"

    # Multi-step grid with a ragged final block (rows=1024, tile_rows=96 -> 11 steps).
    key2 = jax.random.PRNGKey(1)
    x2 = jax.random.normal(key2, (4, 8, 64, 64), dtype=jnp.float32)
    out2 = jax.block_until_ready(
        flatten(x2, materialize=True, target_block_bytes=48 * 1024)
    )
    ref2 = x2.reshape(x2.shape[0], -1)
    assert out2.shape == (4, 8 * 64 * 64), out2.shape
    assert jnp.array_equal(out2, ref2), "Pallas flatten mismatch (ragged tiled path)"

    # bf16 path exercising dtype-aware (16-row) sublane alignment, 2 grid steps.
    x3 = jax.random.normal(key, (2, 16, 16, 16), dtype=jnp.bfloat16)
    out3 = jax.block_until_ready(
        flatten(x3, materialize=True, target_block_bytes=8 * 1024)
    )
    assert jnp.array_equal(out3, x3.reshape(2, -1)), "Pallas flatten mismatch (bf16)"

    # Lane-unaligned total: falls back to the metadata-only reshape.
    x4 = jax.random.normal(key, (3, 5, 7), dtype=jnp.float32)
    out4 = jax.block_until_ready(flatten(x4, materialize=True))
    assert jnp.array_equal(out4, x4.reshape(3, -1)), "fallback mismatch"

    print("KERNEL_OK")
</pallas_src>

<mosaic_0001>
module attributes {stable_mosaic.version = 11 : i64} {
  func.func @_flatten_copy_kernel(%arg0: i32, %arg1: memref<16x128xf32, #tpu.memory_space<vmem>>, %arg2: memref<16x128xf32, #tpu.memory_space<vmem>>) attributes {dimension_semantics = [#tpu.dimension_semantics<parallel>], iteration_bounds = array<i64: 1>, scalar_prefetch = 0 : i64, scratch_operands = 0 : i64, tpu.core_type = #tpu.core_type<tc>, window_params = [{transform_indices = @transform_0, window_bounds = array<i64: 16, 128>}, {transform_indices = @transform_1, window_bounds = array<i64: 16, 128>}]} {
    %c0 = arith.constant 0 : index
    %c0_0 = arith.constant 0 : index
    %0 = vector.load %arg1[%c0, %c0_0] : memref<16x128xf32, #tpu.memory_space<vmem>>, vector<16x128xf32>
    %c0_1 = arith.constant 0 : index
    %c0_2 = arith.constant 0 : index
    %1 = vector.load %arg2[%c0_1, %c0_2] : memref<16x128xf32, #tpu.memory_space<vmem>>, vector<16x128xf32>
    tpu.vector_store %arg2[%c0_1, %c0_2], %0 {strides = array<i32>} : memref<16x128xf32, #tpu.memory_space<vmem>>, vector<16x128xf32>,
    return
  }
  func.func @transform_0(%arg0: i32) -> (i32, i32) {
    %c0_i32 = arith.constant 0 : i32
    %c0_i32_0 = arith.constant 0 : i32
    return %arg0, %c0_i32 : i32, i32
  }
  func.func @transform_1(%arg0: i32) -> (i32, i32) {
    %c0_i32 = arith.constant 0 : i32
    %c0_i32_0 = arith.constant 0 : i32
    return %arg0, %c0_i32 : i32, i32
  }
}

</mosaic_0001>

<llo_original>
// kernel: tpu_custom_call.1
$region0: #{tpu_custom_call.1}
  #allocation0 [shape = 'u32[]', space=smem, size = 0x4, offset = 0x4, fixed_abs, tag = 'smem constant byte address 0x4 - core index']
  #allocation1 [shape = 'u32[72,128]{1,0:T(1,128)}', space=vmem, size = 0x9000, scoped, tag = 'internal scratch']
  %s0 = inlined_call_operand.hbm [shape: f32[16,128], index: 0, kind: input, shape index: {}]
  %s1 = inlined_call_operand.hbm [shape: f32[16,128], index: 1, kind: output, shape index: {}]
  %s2 = sld [smem:[#allocation0]]
  $region18: #{tpu_custom_call.1} parent=0
    _
  %s4 = ssub.s32 1, %s2
  %s5 = scalar_select 0, %s4, %s2
  $region1: #{tpu_custom_call.1} parent=0
    #allocation2 [shape = 'u8[8192]{0}', space=vmem, size = 0x2000, scoped, tag = 'input window, operand 0, single buffered']
    #allocation3 [shape = 's32[1]{0}', space=sflag, size = 0x4, scoped, tag = 'scoped memory for tpu_custom_call.1']
    #allocation4 [shape = 's32[1]{0}', space=sflag, size = 0x4, scoped, tag = 'scoped memory for tpu_custom_call.1']
    #allocation5 [shape = 'u8[8192]{0}', space=vmem, size = 0x2000, scoped, tag = 'output window, operand 0, single buffered']
    %6 = vsyncpa [#allocation3], 0
    %7 = vsyncpa [#allocation4], 0
    // Predicated region
    $region2: #{tpu_custom_call.1} parent=1 // pred_check
      _
    $region3: #{tpu_custom_call.1} parent=1 // pred_check_branch
      %9 = sbr.rel (0) target = $region5
    $region4: #{tpu_custom_call.1} parent=1 // pred_region
      %11 = vsyncadd [#allocation3], 0
      %s12 = sshll.u32 %s0, 4
      %s13 = int_to_ptr.hbm [resolvable:$true] %s12
      %s14 = sshll.u32 [#allocation2], 4
      %s15 = int_to_ptr.vmem [resolvable:$true] %s14
      %20 = dma.hbm_to_vmem [thread:$0]  %s13, 256, %s15, [#allocation3], 128, 128, 8
    $region5: #{tpu_custom_call.1} parent=1 // pred_fallthru
      _
    // Predicated region
    $region6: #{tpu_custom_call.1} parent=1 // pred_check
      _
    $region7: #{tpu_custom_call.1} parent=1 // pred_check_branch
      %22 = sbr.rel (0) target = $region9
    $region8: #{tpu_custom_call.1} parent=1 // pred_region
      %24 = dma.done [#allocation3], 256
    $region9: #{tpu_custom_call.1} parent=1 // pred_fallthru
      _
    %v25 = vld [vmem:[#allocation2] sm:$0xff]
    %v26 = vld [vmem:[#allocation2 + $0x8] sm:$0xff]
    %27 = vst [vmem:[#allocation5] sm:$0xff] %v25
    %28 = vst [vmem:[#allocation5 + $0x8] sm:$0xff] %v26
    // Predicated region
    $region10: #{tpu_custom_call.1} parent=1 // pred_check
      _
    $region11: #{tpu_custom_call.1} parent=1 // pred_check_branch
      %30 = sbr.rel (0) target = $region13
    $region12: #{tpu_custom_call.1} parent=1 // pred_region
      %32 = vsyncadd [#allocation4], 0
      %s33 = sshll.u32 [#allocation5], 4
      %s34 = int_to_ptr.vmem [resolvable:$true] %s33
      %s35 = sshll.u32 %s1, 4
      %s36 = int_to_ptr.hbm [resolvable:$true] %s35
      %41 = dma.vmem_to_hbm [thread:$0]  %s34, 256, %s36, [#allocation4], 128, 128, 8
    $region13: #{tpu_custom_call.1} parent=1 // pred_fallthru
      _
    // Predicated region
    $region14: #{tpu_custom_call.1} parent=1 // pred_check
      _
    $region15: #{tpu_custom_call.1} parent=1 // pred_check_branch
      %43 = sbr.rel (0) target = $region17
    $region16: #{tpu_custom_call.1} parent=1 // pred_region
      %45 = dma.done [#allocation4], 256
    $region17: #{tpu_custom_call.1} parent=1 // pred_fallthru
      _
    %46 = vsyncpa [#allocation3], 1
    %47 = vsyncpa [#allocation4], 1

</llo_original>
